<compile_context>
chip_gen: v7x
topology: tpu7x:2x2x1
jax: 0.10.0
libtpu: 0.0.40
codegen_flags: <defaults>
</compile_context>

<pallas_src>
from functools import partial

import jax
import jax.numpy as jnp
from jax.experimental import pallas as pl
from jax.experimental.pallas import tpu as pltpu


# ----------------------------- kernels ------------------------------------- #


def _mbstd_fused_kernel(x_ref, o_ref, acc_ref, *, n, chw, n_main):
    # x_ref: (N, TILE_L) input tile, o_ref: (N, TILE_L) tile of the fused output,
    # acc_ref: (1, TILE_L) f32 running per-lane sum of unbiased std.
    j = pl.program_id(0)
    inv_n = 1.0 / n
    inv_nm1 = 1.0 / (n - 1) if n > 1 else float("nan")   # N==1 -> NaN, like torch.std

    @pl.when(j == 0)
    def _():
        acc_ref[...] = jnp.zeros_like(acc_ref)

    @pl.when(j < n_main)
    def _():
        xv = x_ref[...]                       # load the tile once; reuse
        o_ref[...] = xv                       # streaming pass-through copy
        xf = xv.astype(jnp.float32)
        # One-pass unbiased variance over the batch axis (matches torch.std default).
        s1 = jnp.sum(xf, axis=0, keepdims=True)
        s2 = jnp.sum(xf * xf, axis=0, keepdims=True)
        var = (s2 - s1 * s1 * inv_n) * inv_nm1
        std = jnp.sqrt(jnp.maximum(var, 0.0))            # clamp one-pass cancellation
        acc_ref[...] += std                               # lane-wise only (no XLU here)

    @pl.when(j >= n_main)
    def _():
        # All main steps are done: reduce once and broadcast into the extra channel.
        std_mean = jnp.sum(acc_ref[...]) * (1.0 / chw)
        o_ref[...] = jnp.broadcast_to(std_mean, o_ref.shape).astype(o_ref.dtype)


def _mbstd_single_block_kernel(x_ref, o_ref, *, n, chw):
    # Fallback for lane-unaligned HW: everything resident in one block.
    xv = x_ref[...]
    xf = xv.astype(jnp.float32)
    inv_n = 1.0 / n
    inv_nm1 = 1.0 / (n - 1) if n > 1 else float("nan")
    s1 = jnp.sum(xf, axis=0, keepdims=True)
    s2 = jnp.sum(xf * xf, axis=0, keepdims=True)
    var = (s2 - s1 * s1 * inv_n) * inv_nm1
    std = jnp.sqrt(jnp.maximum(var, 0.0))
    std_mean = jnp.sum(std) * (1.0 / chw)
    hw = o_ref.shape[1] - chw
    o_ref[:, :chw] = xv
    o_ref[:, chw:] = jnp.broadcast_to(std_mean, (xv.shape[0], hw)).astype(o_ref.dtype)


# --------------------------- sizing helpers --------------------------------- #


def _round_up(v, m):
    return (v + m - 1) // m * m


def _sublane_multiple(itemsize):
    # f32 VMEM tiles are (8,128), bf16 (16,128), int8/fp8 (32,128).
    return max(8, 32 // max(int(itemsize), 1))


def _footprint_bytes(n, tile_l, itemsize, in_buffers=2, out_buffers=2):
    """Padded VMEM footprint of the pipelined fused kernel for one tile size."""
    pad_n = _round_up(n, _sublane_multiple(itemsize))
    pad_n_f32 = _round_up(n, 8)
    io = (in_buffers + out_buffers) * pad_n * tile_l * itemsize   # pipelined in/out tiles
    acc = 8 * tile_l * 4                                          # (1, tile_l) f32, padded
    tmp = 2 * pad_n_f32 * tile_l * 4                              # f32 working copies
    return io + acc + tmp


def _pick_tile_lanes(hw, n, itemsize, max_tile_lanes):
    """Largest 128-multiple dividing HW whose padded pipelined footprint fits the budget."""
    budget = 12 * 1024 * 1024   # under v5e's 16 MiB default scoped VMEM, with headroom
    cap = hw
    if max_tile_lanes is not None:
        cap = min(cap, max(128, (int(max_tile_lanes) // 128) * 128))
    tile = max((cap // 128) * 128, 128)
    while tile > 128 and (hw % tile != 0 or _footprint_bytes(n, tile, itemsize) > budget):
        tile -= 128
    return tile


def _make_input_spec(shape, index_map, n_buffers):
    if n_buffers > 2:
        try:
            return pl.BlockSpec(shape, index_map, pipeline_mode=pl.Buffered(n_buffers))
        except TypeError:
            pass   # BlockSpec without pipeline_mode support: keep default depth-2
    return pl.BlockSpec(shape, index_map)


# ------------------------------ wrappers ------------------------------------ #


def _mbstd_single_block(x_flat, N, C, H, W, itemsize):
    HW = H * W
    CHW = C * HW
    out_cols = CHW + HW
    pad_n = _round_up(N, _sublane_multiple(itemsize))
    footprint = (pad_n * (CHW + out_cols) * itemsize          # resident in + out blocks
                 + 2 * _round_up(N, 8) * CHW * 4)             # f32 temporaries
    vmem_limit = int(min(48 * 1024 * 1024, max(2 * footprint, 16 * 1024 * 1024)))
    # TODO(synk): very large lane-unaligned shapes would need wrapper-side padding to a
    # 128 multiple + the tiled path instead of this single resident block.
    out_flat = pl.pallas_call(
        partial(_mbstd_single_block_kernel, n=N, chw=CHW),
        out_shape=jax.ShapeDtypeStruct((N, out_cols), x_flat.dtype),
        grid_spec=pltpu.PrefetchScalarGridSpec(
            num_scalar_prefetch=0,
            grid=(1,),
            in_specs=[pl.BlockSpec((N, CHW), lambda i: (0, 0))],
            out_specs=pl.BlockSpec((N, out_cols), lambda i: (0, 0)),
        ),
        compiler_params=pltpu.CompilerParams(
            dimension_semantics=("arbitrary",),
            vmem_limit_bytes=vmem_limit,
        ),
    )(x_flat)
    return out_flat.reshape(N, C + 1, H, W)


def minibatch_stddev(x, *, max_tile_lanes=None):
    """PGGAN MinibatchStddev: (N, C, H, W) -> (N, C+1, H, W)."""
    N, C, H, W = x.shape
    HW = H * W
    CHW = C * HW
    out_cols = CHW + HW
    itemsize = jnp.dtype(x.dtype).itemsize
    x_flat = x.reshape(N, CHW)                 # free bitcast view

    if HW % 128 != 0:
        # Lane-unaligned spatial size (PGGAN 4x4 / 8x8 stages): single-block fallback.
        return _mbstd_single_block(x_flat, N, C, H, W, itemsize)

    tile_l = _pick_tile_lanes(HW, N, itemsize, max_tile_lanes)
    n_main = CHW // tile_l          # streaming pass-through steps over the C*H*W columns
    n_tail = HW // tile_l           # steps that write the broadcast stddev channel

    forced_small = max_tile_lanes is not None and tile_l <= 512
    in_buffers = 3 if forced_small else 2
    in_spec = _make_input_spec(
        (N, tile_l),
        # Tail steps clamp to the last input block (same index -> no redundant DMA).
        lambda j: (0, jnp.minimum(j, n_main - 1)),
        in_buffers,
    )

    footprint = _footprint_bytes(N, tile_l, itemsize, in_buffers=in_buffers)
    vmem_limit = int(min(32 * 1024 * 1024, max(2 * footprint, 16 * 1024 * 1024)))

    cost = pl.CostEstimate(
        flops=6 * N * CHW,
        transcendentals=CHW,                                  # sqrt per (c,h,w) column
        bytes_accessed=N * CHW * itemsize + N * out_cols * itemsize,
    )

    out_flat = pl.pallas_call(
        partial(_mbstd_fused_kernel, n=N, chw=CHW, n_main=n_main),
        out_shape=jax.ShapeDtypeStruct((N, out_cols), x.dtype),
        grid_spec=pltpu.PrefetchScalarGridSpec(
            num_scalar_prefetch=0,
            grid=(n_main + n_tail,),
            in_specs=[in_spec],
            out_specs=pl.BlockSpec((N, tile_l), lambda j: (0, j)),
            scratch_shapes=[pltpu.VMEM((1, tile_l), jnp.float32)],
        ),
        compiler_params=pltpu.CompilerParams(
            # Cross-tile std accumulation + ordered tail write -> reduction axis.
            dimension_semantics=("arbitrary",),
            vmem_limit_bytes=vmem_limit,
        ),
        cost_estimate=cost,
    )(x_flat)

    # Free bitcast back to NCHW with the extra channel already fused in.
    return out_flat.reshape(N, C + 1, H, W)


# ------------------------------ reference ----------------------------------- #


def _reference(x):
    # Pure-JAX reference mirroring the PyTorch module.
    N, _, H, W = x.shape
    std = jnp.std(x, axis=0, keepdims=True, ddof=1)           # unbiased, like torch.std
    std_mean = jnp.mean(std, axis=(1, 2, 3), keepdims=True)
    std_mean = jnp.broadcast_to(std_mean, (N, 1, H, W))
    return jnp.concatenate([x, std_mean], axis=1)


if __name__ == "__main__":
    key = jax.random.PRNGKey(0)
    # Small NCHW input consistent with the module's forward: N=2, C=4, 16x16.
    x = jax.random.normal(key, (2, 4, 16, 16), dtype=jnp.float32)

    ref = _reference(x)

    # Default tiling: tile_l = HW = 256 -> grid of 4 main + 1 tail steps.
    out = jax.block_until_ready(minibatch_stddev(x))
    assert out.shape == (2, 5, 16, 16)
    assert jnp.allclose(out, ref, atol=1e-5, rtol=1e-5)

    # Forced tile_l = 128 -> 8 main + 2 tail steps; exercises the cross-tile accumulator,
    # multiple tail writes and the deeper-buffered small-tile input pipeline.
    out_tiled = jax.block_until_ready(minibatch_stddev(x, max_tile_lanes=128))
    assert out_tiled.shape == (2, 5, 16, 16)
    assert jnp.allclose(out_tiled, ref, atol=1e-5, rtol=1e-5)

    print("KERNEL_OK")
</pallas_src>

<mosaic_0001>
module attributes {stable_mosaic.version = 11 : i64} {
  func.func @_mbstd_fused_kernel(%arg0: i32, %arg1: memref<2x256xf32, #tpu.memory_space<vmem>>, %arg2: memref<2x256xf32, #tpu.memory_space<vmem>>, %arg3: memref<1x256xf32, #tpu.memory_space<vmem>>) attributes {dimension_semantics = [#tpu.dimension_semantics<arbitrary>], iteration_bounds = array<i64: 5>, scalar_prefetch = 0 : i64, scratch_operands = 1 : i64, tpu.core_type = #tpu.core_type<tc>, window_params = [{transform_indices = @transform_0, window_bounds = array<i64: 2, 256>}, {transform_indices = @transform_1, window_bounds = array<i64: 2, 256>}]} {
    %c0_i32 = arith.constant 0 : i32
    %0 = arith.cmpi eq, %arg0, %c0_i32 : i32
    %1 = arith.extui %0 : i1 to i32
    %c0_i32_0 = arith.constant 0 : i32
    %2 = arith.cmpi ne, %1, %c0_i32_0 : i32
    scf.if %2 {
      %cst = arith.constant 0.000000e+00 : f32
      %9 = vector.broadcast %cst : f32 to vector<1x256xf32>
      %c0 = arith.constant 0 : index
      %c0_4 = arith.constant 0 : index
      %10 = vector.load %arg3[%c0, %c0_4] : memref<1x256xf32, #tpu.memory_space<vmem>>, vector<1x256xf32>
      tpu.vector_store %arg3[%c0, %c0_4], %9 {strides = array<i32>} : memref<1x256xf32, #tpu.memory_space<vmem>>, vector<1x256xf32>,
    } else {
    }
    %c4_i32 = arith.constant 4 : i32
    %3 = arith.cmpi slt, %arg0, %c4_i32 : i32
    %4 = arith.extui %3 : i1 to i32
    %c0_i32_1 = arith.constant 0 : i32
    %5 = arith.cmpi ne, %4, %c0_i32_1 : i32
    scf.if %5 {
      %c0 = arith.constant 0 : index
      %c0_4 = arith.constant 0 : index
      %9 = vector.load %arg1[%c0, %c0_4] : memref<2x256xf32, #tpu.memory_space<vmem>>, vector<2x256xf32>
      %c0_5 = arith.constant 0 : index
      %c0_6 = arith.constant 0 : index
      %10 = vector.load %arg2[%c0_5, %c0_6] : memref<2x256xf32, #tpu.memory_space<vmem>>, vector<2x256xf32>
      tpu.vector_store %arg2[%c0_5, %c0_6], %9 {strides = array<i32>} : memref<2x256xf32, #tpu.memory_space<vmem>>, vector<2x256xf32>,
      %cst = arith.constant dense<0.000000e+00> : vector<256xf32>
      %11 = vector.multi_reduction <add>, %9, %cst [0] : vector<2x256xf32> to vector<256xf32>
      %12 = vector.shape_cast %11 : vector<256xf32> to vector<1x256xf32>
      %13 = arith.mulf %9, %9 : vector<2x256xf32>
      %cst_7 = arith.constant dense<0.000000e+00> : vector<256xf32>
      %14 = vector.multi_reduction <add>, %13, %cst_7 [0] : vector<2x256xf32> to vector<256xf32>
      %15 = vector.shape_cast %14 : vector<256xf32> to vector<1x256xf32>
      %16 = arith.mulf %12, %12 : vector<1x256xf32>
      %cst_8 = arith.constant 5.000000e-01 : f32
      %17 = vector.broadcast %cst_8 : f32 to vector<1x256xf32>
      %18 = arith.mulf %16, %17 : vector<1x256xf32>
      %19 = arith.subf %15, %18 : vector<1x256xf32>
      %cst_9 = arith.constant 1.000000e+00 : f32
      %20 = vector.broadcast %cst_9 : f32 to vector<1x256xf32>
      %21 = arith.mulf %19, %20 : vector<1x256xf32>
      %cst_10 = arith.constant 0.000000e+00 : f32
      %22 = vector.broadcast %cst_10 : f32 to vector<1x256xf32>
      %23 = arith.maximumf %21, %22 : vector<1x256xf32>
      %24 = math.sqrt %23 : vector<1x256xf32>
      %c0_11 = arith.constant 0 : index
      %c0_12 = arith.constant 0 : index
      %25 = vector.load %arg3[%c0_11, %c0_12] : memref<1x256xf32, #tpu.memory_space<vmem>>, vector<1x256xf32>
      %26 = arith.addf %25, %24 : vector<1x256xf32>
      %c0_13 = arith.constant 0 : index
      %c0_14 = arith.constant 0 : index
      %27 = vector.load %arg3[%c0_13, %c0_14] : memref<1x256xf32, #tpu.memory_space<vmem>>, vector<1x256xf32>
      tpu.vector_store %arg3[%c0_13, %c0_14], %26 {strides = array<i32>} : memref<1x256xf32, #tpu.memory_space<vmem>>, vector<1x256xf32>,
    } else {
    }
    %c4_i32_2 = arith.constant 4 : i32
    %6 = arith.cmpi sge, %arg0, %c4_i32_2 : i32
    %7 = arith.extui %6 : i1 to i32
    %c0_i32_3 = arith.constant 0 : i32
    %8 = arith.cmpi ne, %7, %c0_i32_3 : i32
    scf.if %8 {
      %c0 = arith.constant 0 : index
      %c0_4 = arith.constant 0 : index
      %9 = vector.load %arg3[%c0, %c0_4] : memref<1x256xf32, #tpu.memory_space<vmem>>, vector<1x256xf32>
      %10 = vector.shape_cast %9 : vector<1x256xf32> to vector<1x1x256xf32>
      %cst = arith.constant dense<0.000000e+00> : vector<1xf32>
      %11 = vector.multi_reduction <add>, %10, %cst [1, 2] : vector<1x1x256xf32> to vector<1xf32>
      %12 = vector.shape_cast %11 : vector<1xf32> to vector<1x1x1xf32>
      %13 = vector.extract %12[0, 0, 0] : f32 from vector<1x1x1xf32>
      %cst_5 = arith.constant 9.765625E-4 : f32
      %14 = arith.mulf %13, %cst_5 : f32
      %15 = vector.broadcast %14 : f32 to vector<2x256xf32>
      %c0_6 = arith.constant 0 : index
      %c0_7 = arith.constant 0 : index
      %16 = vector.load %arg2[%c0_6, %c0_7] : memref<2x256xf32, #tpu.memory_space<vmem>>, vector<2x256xf32>
      tpu.vector_store %arg2[%c0_6, %c0_7], %15 {strides = array<i32>} : memref<2x256xf32, #tpu.memory_space<vmem>>, vector<2x256xf32>,
    } else {
    }
    return
  }
  func.func @transform_0(%arg0: i32) -> (i32, i32) {
    %c3_i32 = arith.constant 3 : i32
    %0 = arith.minsi %arg0, %c3_i32 : i32
    %c0_i32 = arith.constant 0 : i32
    %c0_i32_0 = arith.constant 0 : i32
    return %c0_i32, %0 : i32, i32
  }
  func.func @transform_1(%arg0: i32) -> (i32, i32) {
    %c0_i32 = arith.constant 0 : i32
    %c0_i32_0 = arith.constant 0 : i32
    return %c0_i32, %arg0 : i32, i32
  }
}

</mosaic_0001>

<llo_original>
// kernel: tpu_custom_call.1
$region0: #{tpu_custom_call.1}
  #allocation0 [shape = 'u32[]', space=smem, size = 0x4, offset = 0x4, fixed_abs, tag = 'smem constant byte address 0x4 - core index']
  #allocation1 [shape = 'u32[144,128]{1,0:T(1,128)}', space=vmem, size = 0x12000, scoped, tag = 'internal scratch']
  #allocation2 [shape = 'f32[1,256]{1,0:T(1,128)}', space=vmem, size = 0x400, scoped, tag = 'scratch operand']
  %s0 = inlined_call_operand.hbm [shape: f32[2,1024], index: 0, kind: input, shape index: {}]
  %s1 = inlined_call_operand.hbm [shape: f32[2,1280], index: 1, kind: output, shape index: {}]
  %s2 = sld [smem:[#allocation0]]
  $region53: #{tpu_custom_call.1} parent=0
    _
  %s4 = ssub.s32 1, %s2
  %s5 = scalar_select 0, %s4, %s2
  $region1: #{tpu_custom_call.1} parent=0
    #allocation3 [shape = 'u8[4096]{0}', space=vmem, size = 0x1000, scoped, tag = 'input window, operand 0']
    #allocation4 [shape = 's32[2]{0}', space=sflag, size = 0x8, scoped, tag = 'scoped memory for tpu_custom_call.1']
    #allocation5 [shape = 's32[2]{0}', space=sflag, size = 0x8, scoped, tag = 'scoped memory for tpu_custom_call.1']
    #allocation6 [shape = 'u8[4096]{0}', space=vmem, size = 0x1000, scoped, tag = 'output window, operand 0']
    %6 = vsyncpa [#allocation4], 0
    %s7 = scalar_lea.sflag [#allocation4], 1
    %8 = vsyncpa %s7, 0
    %9 = vsyncpa [#allocation5], 0
    %s10 = scalar_lea.sflag [#allocation5], 1
    %11 = vsyncpa %s10, 0
    loop: start=0, step=1, limit=7
    $region2: #{tpu_custom_call.1} parent=1 // loop_pre_header
      _
    $region3: #{tpu_custom_call.1} parent=1 // loop_header
      %s13 = sphi 0, %s17
      %p14 = scmp.ge.s32.totalorder %s13, 7
      %s27 = sphi 0, %s29
      %s30 = sphi 0, %s27
      %s31 = sphi 0, %s30
      %s47 = sphi 0, %s31
      %s53 = sphi 0, %s55
      %s56 = sphi 0, %s53
      %s57 = sphi 0, %s56
      %s73 = sphi 0, %s57
    $region4: #{tpu_custom_call.1} parent=1 // loop_header_branch
      %16 = sbr.rel (%p14) target = $region8
    $region5: #{tpu_custom_call.1} parent=1 // loop_body
      %s18 = ssub.s32 %s13, 1
      %s19 = ssub.s32 %s13, 2
      %s20 = sadd.s32 %s13, 1
      %p21 = scmp.lt.s32.totalorder %s13, 3
      %s22 = scalar_select %p21, %s13, 3
      %p23 = scmp.lt.s32.totalorder %s20, 3
      %s24 = scalar_select %p23, %s20, 3
      %s25 = ssub.s32 %s22, %s24
      %p26 = scmp.eq.s32.totalorder %s25, 0
      %s28 = sadd.s32 %s27, 1
      %s29 = scalar_select %p26, %s27, %s28
      %p32 = pneg %p26
      %p33 = scmp.eq.s32.totalorder %s13, 4
      %p34 = por %p32, %p33
      %p35 = scmp.ne.s32.totalorder %s27, %s30
      %p36 = scmp.eq.s32.totalorder %s13, 0
      %p37 = por %p35, %p36
      %p38 = scmp.ne.s32.totalorder %s27, %s30
      %p39 = scmp.eq.s32.totalorder %s18, 4
      %p40 = por %p38, %p39
      %p41 = scmp.ne.s32.totalorder %s30, %s31
      %p42 = scmp.eq.s32.totalorder %s18, 0
      %p43 = por %p41, %p42
      %p44 = scmp.ne.s32.totalorder %s30, %s31
      %p45 = scmp.eq.s32.totalorder %s19, 4
      %p46 = por %p44, %p45
      %p48 = scmp.ne.s32.totalorder %s31, %s47
      %p49 = scmp.eq.s32.totalorder %s19, 0
      %p50 = por %p48, %p49
      %s51 = ssub.s32 %s13, %s20
      %p52 = scmp.eq.s32.totalorder %s51, 0
      %s54 = sadd.s32 %s53, 1
      %s55 = scalar_select %p52, %s53, %s54
      %p58 = pneg %p52
      %p59 = scmp.eq.s32.totalorder %s13, 4
      %p60 = por %p58, %p59
      %p61 = scmp.ne.s32.totalorder %s53, %s56
      %p62 = scmp.eq.s32.totalorder %s13, 0
      %p63 = por %p61, %p62
      %p64 = scmp.ne.s32.totalorder %s53, %s56
      %p65 = scmp.eq.s32.totalorder %s18, 4
      %p66 = por %p64, %p65
      %p67 = scmp.ne.s32.totalorder %s56, %s57
      %p68 = scmp.eq.s32.totalorder %s18, 0
      %p69 = por %p67, %p68
      %p70 = scmp.ne.s32.totalorder %s56, %s57
      %p71 = scmp.eq.s32.totalorder %s19, 4
      %p72 = por %p70, %p71
      %p74 = scmp.ne.s32.totalorder %s57, %s73
      %p75 = scmp.eq.s32.totalorder %s19, 0
      %p76 = por %p74, %p75
      %p77 = scmp.le.s32.totalorder 1, %s13
      %p78 = scmp.lt.s32.totalorder %s13, 6
      %p79 = pnand %p77, %p78
      %p80 = pneg %p79
      // Predicated region
      $region9: #{tpu_custom_call.1} parent=5 // pred_check
        _
      $region10: #{tpu_custom_call.1} parent=5 // pred_check_branch
        %82 = sbr.rel (%p79) target = $region12
      $region11: #{tpu_custom_call.1} parent=5 // pred_region
        %s83 = ssub.s32 %s13, 1
      $region12: #{tpu_custom_call.1} parent=5 // pred_fallthru
        _
      %p84 = scmp.lt.s32.totalorder %s13, 5
      // Predicated region
      $region13: #{tpu_custom_call.1} parent=5 // pred_check
        %p85 = pneg %p84
      $region14: #{tpu_custom_call.1} parent=5 // pred_check_branch
        %87 = sbr.rel (%p85) target = $region16
      $region15: #{tpu_custom_call.1} parent=5 // pred_region
        // Predicated region
        $region17: #{tpu_custom_call.1} parent=15 // pred_check
          %p88 = pneg %p37
        $region18: #{tpu_custom_call.1} parent=15 // pred_check_branch
          %90 = sbr.rel (%p88) target = $region20
        $region19: #{tpu_custom_call.1} parent=15 // pred_region
          %s91 = sand.u32 %s27, 1
          %s92 = scalar_lea.sflag [#allocation4], %s91
          %s93 = sand.u32 %s27, 1
          %s94 = smul.addr %s93, 4
          %s95 = scalar_lea.vmem [#allocation3], %s94
          %p96 = scmp.lt.s32.totalorder %s13, 3
          %s97 = scalar_select %p96, %s13, 3
          %s98 = smul.u32 2, %s97
          %s100 = ssub.s32 64, 64
          %101 = vsyncadd %s92, %s100
          %s102 = smul.addr %s98, 32
          %s103 = scalar_lea.hbm %s0, %s102
          %s105 = sshll.u32 %s95, 4
          %s106 = int_to_ptr.vmem [resolvable:$true] %s105
          %108 = dma.hbm_to_vmem [thread:$0]  %s103, 64, %s106, %s92
        $region20: #{tpu_custom_call.1} parent=15 // pred_fallthru
          _
      $region16: #{tpu_custom_call.1} parent=5 // pred_fallthru
        _
      %p109 = scmp.le.s32.totalorder 1, %s13
      %p110 = scmp.lt.s32.totalorder %s13, 6
      %p111 = pnand %p109, %p110
      %p112 = pneg %p111
      // Predicated region
      $region21: #{tpu_custom_call.1} parent=5 // pred_check
        _
      $region22: #{tpu_custom_call.1} parent=5 // pred_check_branch
        %114 = sbr.rel (%p111) target = $region24
      $region23: #{tpu_custom_call.1} parent=5 // pred_region
        %s115 = ssub.s32 %s13, 1
        %s116 = sand.u32 %s30, 1
        %s117 = scalar_lea.sflag [#allocation4], %s116
        %s118 = sand.u32 %s30, 1
        %s119 = smul.addr %s118, 4
        %s120 = scalar_lea.vmem [#allocation3], %s119
        // Predicated region
        $region25: #{tpu_custom_call.1} parent=23 // pred_check
          %p121 = pneg %p43
        $region26: #{tpu_custom_call.1} parent=23 // pred_check_branch
          %123 = sbr.rel (%p121) target = $region28
        $region27: #{tpu_custom_call.1} parent=23 // pred_region
          %124 = dma.done %s117, 64
        $region28: #{tpu_custom_call.1} parent=23 // pred_fallthru
          _
        %s125 = sand.u32 %s30, 1
        %s126 = scalar_lea.sflag [#allocation4], %s125
        %s127 = sand.u32 %s30, 1
        %s128 = smul.addr %s127, 4
        %s129 = scalar_lea.vmem [#allocation3], %s128
        %p130 = pneg %p43
        %p131 = pneg %p40
        %p132 = pneg %p69
        %p133 = pneg %p66
        %s134 = sand.u32 %s56, 1
        %s135 = scalar_lea.sflag [#allocation5], %s134
        %s136 = sand.u32 %s56, 1
        %s137 = smul.addr %s136, 4
        %s138 = scalar_lea.vmem [#allocation6], %s137
        %p139 = scmp.lt.s32.totalorder %s18, 3
        %s140 = scalar_select %p139, %s18, 3
        %s141 = smul.u32 2, %s140
        %s142 = smul.u32 2, %s18
        %p143 = scmp.eq.s32.totalorder %s18, 0
        // Predicated region
        $region29: #{tpu_custom_call.1} parent=23 // pred_check
          %p144 = pneg %p143
        $region30: #{tpu_custom_call.1} parent=23 // pred_check_branch
          %146 = sbr.rel (%p144) target = $region32
        $region31: #{tpu_custom_call.1} parent=23 // pred_region
          %v147 = vlaneseq
          %vm148 = vcmp.ge.s32.totalorder %v147, 0
          %vm149 = vcmp.lt.s32.totalorder %v147, 256
          %vm150 = vmand %vm148, %vm149
          %151 = vst.msk [vmem:[#allocation2] sm:$0x3] %vm150, 0.0
        $region32: #{tpu_custom_call.1} parent=23 // pred_fallthru
          _
        %p152 = scmp.lt.s32.totalorder %s18, 4
        // Predicated region
        $region33: #{tpu_custom_call.1} parent=23 // pred_check
          %p153 = pneg %p152
        $region34: #{tpu_custom_call.1} parent=23 // pred_check_branch
          %155 = sbr.rel (%p153) target = $region36
        $region35: #{tpu_custom_call.1} parent=23 // pred_region
          %v156 = vld [vmem:[%s120] sm:$0xf]
          %157 = vst [vmem:[%s138] sm:$0xf] %v156
          %v160 = vunpack.c.l.s4 1983009808
          %v161 = vunpack.c.0.s8 %v160
          %v162 = vlaneseq
          %v163 = vshrl.u32 %v162, 7
          %v164 = vsub.s32 %v161, %v163
          %v165 = vrot.slane %v156, %v164
          %v166 = vcombine.high %v165, %v165
          %vm169 = vcmask 1041408
          %v170 = vsel %vm169, %v165, 0.0
          %v171 = vrot.slane %v170, 4
          %v172 = vadd.f32 %v170, %v171
          %v173 = vrot.slane %v172, 2
          %v174 = vadd.f32 %v172, %v173
          %v175 = vrot.slane %v174, 1
          %v176 = vadd.f32 %v174, %v175
          %v177 = vsel %vm169, %v166, 0.0
          %v178 = vrot.slane %v177, 4
          %v179 = vadd.f32 %v177, %v178
          %v180 = vrot.slane %v179, 2
          %v181 = vadd.f32 %v179, %v180
          %v182 = vrot.slane %v181, 1
          %v183 = vadd.f32 %v181, %v182
          %v184 = vmul.f32 %v156, %v156
          %v187 = vunpack.c.l.s4 1983009808
          %v188 = vunpack.c.0.s8 %v187
          %v189 = vlaneseq
          %v190 = vshrl.u32 %v189, 7
          %v191 = vsub.s32 %v188, %v190
          %v192 = vrot.slane %v184, %v191
          %v193 = vcombine.high %v192, %v192
          %v196 = vsel %vm169, %v192, 0.0
          %v197 = vrot.slane %v196, 4
          %v198 = vadd.f32 %v196, %v197
          %v199 = vrot.slane %v198, 2
          %v200 = vadd.f32 %v198, %v199
          %v201 = vrot.slane %v200, 1
          %v202 = vadd.f32 %v200, %v201
          %v203 = vsel %vm169, %v193, 0.0
          %v204 = vrot.slane %v203, 4
          %v205 = vadd.f32 %v203, %v204
          %v206 = vrot.slane %v205, 2
          %v207 = vadd.f32 %v205, %v206
          %v208 = vrot.slane %v207, 1
          %v209 = vadd.f32 %v207, %v208
          %v210 = vmul.f32 %v176, %v176
          %v211 = vmul.f32 %v183, %v183
          %v212 = vmul.f32 %v210, 0.5
          %v213 = vmul.f32 %v211, 0.5
          %v214 = vsub.f32 %v202, %v212
          %v215 = vsub.f32 %v209, %v213
          %v216 = vmax.f32 %v214, 0.0
          %v217 = vmax.f32 %v215, 0.0
          %v218 = vrsqrt.pop %v216
          %v219 = vmul.f32 %v216, %v218
          %vm220 = vcmp.eq.f32.partialorder %v216, inf
          %v221 = vsel %vm220, %v216, %v219
          %vm222 = vcmp.eq.f32.partialorder %v216, 0.0
          %v223 = vand.u32 %v216, 2147483648
          %v224 = vsel %vm222, %v223, %v221
          %v225 = vrsqrt.pop %v217
          %v226 = vmul.f32 %v217, %v225
          %vm227 = vcmp.eq.f32.partialorder %v217, inf
          %v228 = vsel %vm227, %v217, %v226
          %vm229 = vcmp.eq.f32.partialorder %v217, 0.0
          %v230 = vand.u32 %v217, 2147483648
          %v231 = vsel %vm229, %v230, %v228
          %v232 = vld [vmem:[#allocation2] sm:$0x3]
          %v235 = vcombine.low %v224, %v231
          %v237 = vunpack.c.l.s4 1966171168
          %v238 = vunpack.c.0.s8 %v237
          %v239 = vlaneseq
          %v240 = vshrl.u32 %v239, 7
          %v241 = vsub.s32 %v238, %v240
          %v242 = vrot.slane %v235, %v241
          %v244 = vunpack.c.l.s4 1966171168
          %v245 = vunpack.c.0.s8 %v244
          %v246 = vlaneseq
          %v247 = vshrl.u32 %v246, 7
          %v248 = vsub.s32 %v245, %v247
          %v249 = vrot.slane %v242, %v248
          %v251 = vadd.f32 %v232, %v249
          %v252 = vlaneseq
          %vm253 = vcmp.ge.s32.totalorder %v252, 0
          %vm254 = vcmp.lt.s32.totalorder %v252, 256
          %vm255 = vmand %vm253, %vm254
          %256 = vst.msk [vmem:[#allocation2] sm:$0x3] %vm255, %v251
        $region36: #{tpu_custom_call.1} parent=23 // pred_fallthru
          _
        %p257 = scmp.ge.s32.totalorder %s18, 4
        // Predicated region
        $region37: #{tpu_custom_call.1} parent=23 // pred_check
          %p258 = pneg %p257
        $region38: #{tpu_custom_call.1} parent=23 // pred_check_branch
          %260 = sbr.rel (%p258) target = $region40
        $region39: #{tpu_custom_call.1} parent=23 // pred_region
          %v261 = vld [vmem:[#allocation2] sm:$0x3]
          %v263 = vlaneseq
          %v264 = vshrl.u32 %v263, 7
          %v265 = vsub.s32 0, %v264
          %v266 = vrot.slane %v261, %v265
          %v267 = vlaneseq
          %v268 = vshrl.u32 %v267, 7
          %v269 = vsub.s32 1, %v268
          %v270 = vrot.slane %v261, %v269
          %vm273 = vcmask 1040384
          %v274 = vsel %vm273, %v266, 0.0
          %v275 = vsel %vm273, %v270, 0.0
          %v276 = vadd.f32 %v274, %v275
          %277 = vadd.xlane.f32.xlu0 %v276
          %v278 = vpop.xlane.xlu0 %277
          %v279 = vrot.slane %v278, 4
          %v280 = vadd.f32 %v278, %v279
          %v281 = vrot.slane %v280, 2
          %v282 = vadd.f32 %v280, %v281
          %v283 = vrot.slane %v282, 1
          %v284 = vadd.f32 %v282, %v283
          %s285 = vtos %v284
          %s286 = smul.f32 %s285, 0.0009765625
          %v287 = vstv %s286
          %288 = vst [vmem:[%s138] sm:$0xf] %v287
        $region40: #{tpu_custom_call.1} parent=23 // pred_fallthru
          _
        %s289 = sand.u32 %s56, 1
        %s290 = scalar_lea.sflag [#allocation5], %s289
        %s291 = sand.u32 %s56, 1
        %s292 = smul.addr %s291, 4
        %s293 = scalar_lea.vmem [#allocation6], %s292
        // Predicated region
        $region41: #{tpu_custom_call.1} parent=23 // pred_check
          %p294 = pneg %p66
        $region42: #{tpu_custom_call.1} parent=23 // pred_check_branch
          %296 = sbr.rel (%p294) target = $region44
        $region43: #{tpu_custom_call.1} parent=23 // pred_region
          %s297 = smul.u32 2, %s18
          %s299 = ssub.s32 64, 64
          %300 = vsyncadd %s290, %s299
          %s301 = smul.addr %s297, 32
          %s302 = scalar_lea.hbm %s1, %s301
          %s304 = sshll.u32 %s293, 4
          %s305 = int_to_ptr.vmem [resolvable:$true] %s304
          %307 = dma.vmem_to_hbm [thread:$0]  %s305, 64, %s302, %s290
        $region44: #{tpu_custom_call.1} parent=23 // pred_fallthru
          _
      $region24: #{tpu_custom_call.1} parent=5 // pred_fallthru
        _
      %p308 = scmp.le.s32.totalorder 2, %s13
      // Predicated region
      $region45: #{tpu_custom_call.1} parent=5 // pred_check
        %p309 = pneg %p308
      $region46: #{tpu_custom_call.1} parent=5 // pred_check_branch
        %311 = sbr.rel (%p309) target = $region48
      $region47: #{tpu_custom_call.1} parent=5 // pred_region
        %s312 = ssub.s32 %s13, 2
        // Predicated region
        $region49: #{tpu_custom_call.1} parent=47 // pred_check
          %p313 = pneg %p72
        $region50: #{tpu_custom_call.1} parent=47 // pred_check_branch
          %315 = sbr.rel (%p313) target = $region52
        $region51: #{tpu_custom_call.1} parent=47 // pred_region
          %s316 = sand.u32 %s57, 1
          %s317 = scalar_lea.sflag [#allocation5], %s316
          %s318 = sand.u32 %s57, 1
          %s319 = smul.addr %s318, 4
          %s320 = scalar_lea.vmem [#allocation6], %s319
          %321 = dma.done %s317, 64
        $region52: #{tpu_custom_call.1} parent=47 // pred_fallthru
          _
      $region48: #{tpu_custom_call.1} parent=5 // pred_fallthru
        _
    $region6: #{tpu_custom_call.1} parent=1 // loop_footer
      %s17 = sadd.s32 1, %s13
    $region7: #{tpu_custom_call.1} parent=1 // loop_footer_branch
      %12 = sbr.rel target = $region3
    $region8: #{tpu_custom_call.1} parent=1 // loop_exit
      _
    %322 = vsyncpa [#allocation4], 1
    %s323 = scalar_lea.sflag [#allocation4], 1
    %324 = vsyncpa %s323, 1
    %325 = vsyncpa [#allocation5], 1
    %s326 = scalar_lea.sflag [#allocation5], 1
    %327 = vsyncpa %s326, 1

</llo_original>
